<compile_context>
chip_gen: v7x
topology: tpu7x:2x2x1
jax: 0.10.0
libtpu: 0.0.40
codegen_flags: <defaults>
</compile_context>

<pallas_src>
import functools

import jax
import jax.numpy as jnp
from jax.experimental import pallas as pl
from jax.experimental.pallas import tpu as pltpu


def _round_up(x, m):
    return ((x + m - 1) // m) * m


def _rmsnorm_kernel(x_ref, w_ref, o_ref, *, eps, inv_hidden, use_rsqrt, use_cast):
    # x_ref: (tm, hidden) tile; w_ref: (1, hidden) resident; o_ref: (tm, hidden).
    x_in = x_ref[...]
    x = x_in.astype(jnp.float32) if use_cast else x_in
    # mean over the logical hidden width; sum * (1/hidden) avoids a full divide.
    var = jnp.sum(x * x, axis=-1, keepdims=True) * inv_hidden
    if use_rsqrt:
        scale = jax.lax.rsqrt(var + eps)           # EUP path (free bundle slot)
    else:
        scale = 1.0 / jnp.sqrt(var + eps)          # reciprocal only on the (tm, 1) column
    normed = x * scale
    if use_cast:
        # torch: hidden_states.to(input_dtype) BEFORE the weight multiply
        # (preserves the reference's intermediate rounding step).
        normed = normed.astype(x_in.dtype)
    # Weight was pre-cast to the output dtype in the wrapper; the multiply
    # promotes to out dtype, so the trailing astype is a no-op in common cases.
    o_ref[...] = (w_ref[...] * normed).astype(o_ref.dtype)


def _pick_row_tile(rows, hidden, in_itemsize, out_itemsize, sublane_pack):
    """Row tile: large enough to stream at roofline, small enough for a multi-step grid."""
    try:
        vmem_cap = int(pltpu.get_tpu_info().vmem_capacity_bytes)
    except Exception:  # query unavailable -> v7x-safe default (64 MiB per TC)
        vmem_cap = 64 * 1024 * 1024
    budget = min(vmem_cap // 2, 24 * 1024 * 1024)   # pipelined-tile budget
    bytes_per_row = 2 * hidden * (in_itemsize + out_itemsize)  # double-buffered in + out
    tm = budget // max(1, bytes_per_row)
    tm = min(tm, 512)                               # roofline saturates ~512-row tiles
    # Aim for >= 8 grid steps (v7x megacore sharding + DMA/compute overlap),
    # but never shrink below one sublane pack.
    tm_for_steps = (rows // 8) // sublane_pack * sublane_pack
    if tm_for_steps >= sublane_pack:
        tm = min(tm, tm_for_steps)
    tm = max(sublane_pack, (tm // sublane_pack) * sublane_pack)
    tm = min(tm, _round_up(rows, sublane_pack))     # don't exceed the problem
    return tm, vmem_cap


def rmsnorm(x, weight, *, eps=1e-6, use_rsqrt=True, use_cast=True, out_dtype=None):
    """Pallas TPU RMSNorm matching the PyTorch reference module.

    x: (..., hidden); weight: (hidden,).
    Default output dtype follows torch promotion (weight.dtype x input dtype).
    Pass out_dtype=x.dtype to halve output HBM traffic (LLaMA/HF style).
    """
    orig_shape = x.shape
    hidden = orig_shape[-1]
    rows = 1
    for d in orig_shape[:-1]:
        rows *= d

    in_dtype = jnp.dtype(x.dtype)
    if out_dtype is None:
        out_dtype = jnp.promote_types(weight.dtype, in_dtype)
    out_dtype = jnp.dtype(out_dtype)

    # Sublane pack from the NARROWEST dtype touching HBM so both the input and
    # output tiles stay dense (8 rows for 4-byte, 16 for 2-byte, 32 for 1-byte).
    min_itemsize = max(1, min(in_dtype.itemsize, out_dtype.itemsize))
    sublane_pack = max(8, 32 // min_itemsize)

    tm, vmem_cap = _pick_row_tile(rows, hidden, in_dtype.itemsize,
                                  out_dtype.itemsize, sublane_pack)
    grid = (pl.cdiv(rows, tm),)                    # ragged last tile handled by Pallas

    x2d = x.reshape(rows, hidden)                  # collapse of leading dims, no copy
    w2d = weight.astype(out_dtype).reshape(1, hidden)

    # Scoped VMEM: double-buffered in/out tiles + resident weight + slack.
    needed = (2 * tm * hidden * (in_dtype.itemsize + out_dtype.itemsize)
              + 2 * hidden * out_dtype.itemsize + (2 << 20))
    # TODO(synk): for extreme hidden widths where even a sublane_pack-row tile
    # exceeds ~90% of VMEM, split the hidden axis with partial-sum accumulation.
    vmem_limit = int(min(int(vmem_cap * 0.9), max(32 << 20, needed)))

    kernel = functools.partial(
        _rmsnorm_kernel,
        eps=float(eps),
        inv_hidden=1.0 / float(hidden),
        use_rsqrt=use_rsqrt,
        use_cast=use_cast,
    )

    out2d = pl.pallas_call(
        kernel,
        out_shape=jax.ShapeDtypeStruct((rows, hidden), out_dtype),
        grid_spec=pltpu.PrefetchScalarGridSpec(
            num_scalar_prefetch=0,
            grid=grid,
            in_specs=[
                pl.BlockSpec((tm, hidden), lambda i: (i, 0)),   # x tile (pipelined)
                pl.BlockSpec((1, hidden), lambda i: (0, 0)),    # weight (resident)
            ],
            out_specs=pl.BlockSpec((tm, hidden), lambda i: (i, 0)),
        ),
        compiler_params=pltpu.CompilerParams(
            dimension_semantics=("parallel",),   # row tiles shard across TCs on v7x
            vmem_limit_bytes=vmem_limit,
        ),
    )(x2d, w2d)

    return out2d.reshape(orig_shape)


if __name__ == "__main__":
    key = jax.random.PRNGKey(0)
    kx, kw = jax.random.split(key)

    batch, seq, hidden = 2, 8, 32
    x = jax.random.normal(kx, (batch, seq, hidden), dtype=jnp.float32)
    # "randn"-style weight init (matches torch.randn(hidden_size) shape/dtype)
    weight = jax.random.normal(kw, (hidden,), dtype=jnp.float32)

    out = rmsnorm(x, weight, eps=1e-6, use_rsqrt=True, use_cast=True)
    jax.block_until_ready(out)

    # Pure-JAX reference mirroring the PyTorch forward.
    xf = x.astype(jnp.float32)
    var = jnp.mean(xf * xf, axis=-1, keepdims=True)
    ref = weight * (xf * jax.lax.rsqrt(var + 1e-6)).astype(x.dtype)

    assert out.shape == ref.shape and out.dtype == ref.dtype
    assert jnp.allclose(out, ref, atol=1e-5, rtol=1e-5)

    print("KERNEL_OK")
</pallas_src>

<mosaic_0001>
module attributes {stable_mosaic.version = 11 : i64} {
  func.func @_rmsnorm_kernel(%arg0: i32, %arg1: memref<16x32xf32, #tpu.memory_space<vmem>>, %arg2: memref<1x32xf32, #tpu.memory_space<vmem>>, %arg3: memref<16x32xf32, #tpu.memory_space<vmem>>) attributes {dimension_semantics = [#tpu.dimension_semantics<parallel>], iteration_bounds = array<i64: 1>, scalar_prefetch = 0 : i64, scratch_operands = 0 : i64, tpu.core_type = #tpu.core_type<tc>, window_params = [{transform_indices = @transform_0, window_bounds = array<i64: 16, 32>}, {pipeline_mode = #tpu.pipeline_mode<synchronous>, transform_indices = @transform_1, window_bounds = array<i64: 1, 32>}, {transform_indices = @transform_2, window_bounds = array<i64: 16, 32>}]} {
    %c0 = arith.constant 0 : index
    %c0_0 = arith.constant 0 : index
    %0 = vector.load %arg1[%c0, %c0_0] : memref<16x32xf32, #tpu.memory_space<vmem>>, vector<16x32xf32>
    %1 = arith.mulf %0, %0 : vector<16x32xf32>
    %cst = arith.constant dense<0.000000e+00> : vector<16xf32>
    %2 = vector.multi_reduction <add>, %1, %cst [1] : vector<16x32xf32> to vector<16xf32>
    %3 = vector.shape_cast %2 : vector<16xf32> to vector<16x1xf32>
    %cst_1 = arith.constant 3.125000e-02 : f32
    %4 = vector.broadcast %cst_1 : f32 to vector<16x1xf32>
    %5 = arith.mulf %3, %4 : vector<16x1xf32>
    %cst_2 = arith.constant 9.99999997E-7 : f32
    %6 = vector.broadcast %cst_2 : f32 to vector<16x1xf32>
    %7 = arith.addf %5, %6 : vector<16x1xf32>
    %8 = math.rsqrt %7 : vector<16x1xf32>
    %9 = vector.broadcast %8 : vector<16x1xf32> to vector<16x32xf32>
    %10 = arith.mulf %0, %9 : vector<16x32xf32>
    %c0_3 = arith.constant 0 : index
    %c0_4 = arith.constant 0 : index
    %11 = vector.load %arg2[%c0_3, %c0_4] : memref<1x32xf32, #tpu.memory_space<vmem>>, vector<1x32xf32>
    %12 = vector.broadcast %11 : vector<1x32xf32> to vector<16x32xf32>
    %13 = arith.mulf %12, %10 : vector<16x32xf32>
    %c0_5 = arith.constant 0 : index
    %c0_6 = arith.constant 0 : index
    %14 = vector.load %arg3[%c0_5, %c0_6] : memref<16x32xf32, #tpu.memory_space<vmem>>, vector<16x32xf32>
    tpu.vector_store %arg3[%c0_5, %c0_6], %13 {strides = array<i32>} : memref<16x32xf32, #tpu.memory_space<vmem>>, vector<16x32xf32>,
    return
  }
  func.func @transform_0(%arg0: i32) -> (i32, i32) {
    %c0_i32 = arith.constant 0 : i32
    %c0_i32_0 = arith.constant 0 : i32
    return %arg0, %c0_i32 : i32, i32
  }
  func.func @transform_1(%arg0: i32) -> (i32, i32) {
    %c0_i32 = arith.constant 0 : i32
    %c0_i32_0 = arith.constant 0 : i32
    %c0_i32_1 = arith.constant 0 : i32
    return %c0_i32, %c0_i32_0 : i32, i32
  }
  func.func @transform_2(%arg0: i32) -> (i32, i32) {
    %c0_i32 = arith.constant 0 : i32
    %c0_i32_0 = arith.constant 0 : i32
    return %arg0, %c0_i32 : i32, i32
  }
}

</mosaic_0001>

<llo_original>
// kernel: tpu_custom_call.1
$region0: #{tpu_custom_call.1}
  #allocation0 [shape = 'u32[]', space=smem, size = 0x4, offset = 0x4, fixed_abs, tag = 'smem constant byte address 0x4 - core index']
  #allocation1 [shape = 'u32[144,128]{1,0:T(1,128)}', space=vmem, size = 0x12000, scoped, tag = 'internal scratch']
  %s0 = inlined_call_operand.hbm [shape: f32[16,32], index: 0, kind: input, shape index: {}]
  %s1 = inlined_call_operand.vmem [shape: f32[1,32], index: 1, kind: input, shape index: {}]
  %s2 = inlined_call_operand.hbm [shape: f32[16,32], index: 2, kind: output, shape index: {}]
  %s3 = sld [smem:[#allocation0]]
  $region22: #{tpu_custom_call.1} parent=0
    _
  %s5 = ssub.s32 1, %s3
  %s6 = scalar_select 0, %s5, %s3
  $region1: #{tpu_custom_call.1} parent=0
    #allocation2 [shape = 'u8[8192]{0}', space=vmem, size = 0x2000, scoped, tag = 'input window, operand 0, single buffered']
    #allocation3 [shape = 's32[1]{0}', space=sflag, size = 0x4, scoped, tag = 'scoped memory for tpu_custom_call.1']
    #allocation4 [shape = 's32[1]{0}', space=sflag, size = 0x4, scoped, tag = 'scoped memory for tpu_custom_call.1']
    #allocation5 [shape = 'u8[8192]{0}', space=vmem, size = 0x2000, scoped, tag = 'output window, operand 0, single buffered']
    %7 = vsyncpa [#allocation3], 0
    %8 = vsyncpa [#allocation4], 0
    // Predicated region
    $region2: #{tpu_custom_call.1} parent=1 // pred_check
      _
    $region3: #{tpu_custom_call.1} parent=1 // pred_check_branch
      %10 = sbr.rel (0) target = $region5
    $region4: #{tpu_custom_call.1} parent=1 // pred_region
      %s12 = ssub.s32 256, 256
      %13 = vsyncadd [#allocation3], %s12
      %s14 = sshll.u32 [#allocation2], 4
      %s15 = int_to_ptr.vmem [resolvable:$true] %s14
      %20 = dma.hbm_to_vmem [thread:$0]  %s0, 256, %s15, [#allocation3], 128, 128, 8
    $region5: #{tpu_custom_call.1} parent=1 // pred_fallthru
      _
    // Predicated region
    $region6: #{tpu_custom_call.1} parent=1 // pred_check
      _
    $region7: #{tpu_custom_call.1} parent=1 // pred_check_branch
      %22 = sbr.rel (0) target = $region9
    $region8: #{tpu_custom_call.1} parent=1 // pred_region
      _
    $region9: #{tpu_custom_call.1} parent=1 // pred_fallthru
      _
    // Predicated region
    $region10: #{tpu_custom_call.1} parent=1 // pred_check
      _
    $region11: #{tpu_custom_call.1} parent=1 // pred_check_branch
      %24 = sbr.rel (0) target = $region13
    $region12: #{tpu_custom_call.1} parent=1 // pred_region
      %25 = dma.done [#allocation3], 256
    $region13: #{tpu_custom_call.1} parent=1 // pred_fallthru
      _
    %v26 = vld [vmem:[#allocation2] sm:$0xff]
    %v27 = vld [vmem:[#allocation2 + $0x8] sm:$0xff]
    %v28 = vmul.f32 %v26, %v26
    %v29 = vmul.f32 %v27, %v27
    %vm30 = vcmask 261120
    %v31 = vsel %vm30, %v28, 0.0
    %32 = vadd.xlane.f32.xlu0 %v31
    %v33 = vpop.xlane.xlu0 %32
    %v34 = vsel %vm30, %v29, 0.0
    %35 = vadd.xlane.f32.xlu0 %v34
    %v36 = vpop.xlane.xlu0 %35
    %v37 = vmul.f32 %v33, 0.03125
    %v38 = vmul.f32 %v36, 0.03125
    %v39 = vadd.f32 %v37, 1e-06
    %v40 = vadd.f32 %v38, 1e-06
    %v41 = vrsqrt.pop %v39
    %v42 = vrsqrt.pop %v40
    %v43 = vmul.f32 %v26, %v41
    %v44 = vmul.f32 %v27, %v42
    %v45 = vld [vmem:[%s1] sm:$0x1]
    %v47 = vlaneseq
    %v48 = vshrl.u32 %v47, 7
    %v49 = vsub.s32 0, %v48
    %v50 = vrot.slane %v45, %v49
    %v52 = vmul.f32 %v50, %v43
    %v53 = vmul.f32 %v50, %v44
    %54 = vst.msk [vmem:[#allocation5] sm:$0xff] %vm30, %v52
    %55 = vst.msk [vmem:[#allocation5 + $0x8] sm:$0xff] %vm30, %v53
    // Predicated region
    $region14: #{tpu_custom_call.1} parent=1 // pred_check
      _
    $region15: #{tpu_custom_call.1} parent=1 // pred_check_branch
      %57 = sbr.rel (0) target = $region17
    $region16: #{tpu_custom_call.1} parent=1 // pred_region
      %s59 = ssub.s32 256, 256
      %60 = vsyncadd [#allocation4], %s59
      %s61 = sshll.u32 [#allocation5], 4
      %s62 = int_to_ptr.vmem [resolvable:$true] %s61
      %67 = dma.vmem_to_hbm [thread:$0]  %s62, 256, %s2, [#allocation4], 128, 128, 8
    $region17: #{tpu_custom_call.1} parent=1 // pred_fallthru
      _
    // Predicated region
    $region18: #{tpu_custom_call.1} parent=1 // pred_check
      _
    $region19: #{tpu_custom_call.1} parent=1 // pred_check_branch
      %69 = sbr.rel (0) target = $region21
    $region20: #{tpu_custom_call.1} parent=1 // pred_region
      %70 = dma.done [#allocation4], 256
    $region21: #{tpu_custom_call.1} parent=1 // pred_fallthru
      _
    %71 = vsyncpa [#allocation3], 1
    %72 = vsyncpa [#allocation4], 1

</llo_original>
